<compile_context>
chip_gen: v7x
topology: tpu7x:2x2x1
jax: 0.10.0
libtpu: 0.0.40
codegen_flags: <defaults>
</compile_context>

<pallas_src>
import functools
import math

import jax
import jax.numpy as jnp
from jax.experimental import pallas as pl
from jax.experimental.pallas import tpu as pltpu


_SMALL_BYTES = 128 * 1024  # below this, use the single fused kernel


# --------------------------------------------------------------------------
# Fused small-batch kernel: whole x resident in VMEM, one launch.
# --------------------------------------------------------------------------
def _fused_kernel(count_ref, x_ref, rm_ref, rv_ref, y_ref, mean_ref, var_ref,
                  *, batch, epsilon):
    x = x_ref[...].astype(jnp.float32)
    rm = rm_ref[...]
    rv = rv_ref[...]
    cnt = count_ref[0]
    b = jnp.float32(batch)

    xc = x - rm                                      # shifted moments (numerics)
    ms = jnp.sum(xc, axis=0, keepdims=True) / b      # batch_mean - running_mean
    bv = jnp.maximum(jnp.sum(xc * xc, axis=0, keepdims=True) / b - ms * ms, 0.0)

    tot = cnt + b
    new_mean = rm + ms * b / tot
    m2 = rv * cnt + bv * b + ms * ms * cnt * b / tot
    new_var = m2 / tot
    istd = jax.lax.rsqrt(new_var + jnp.float32(epsilon))

    y_ref[...] = ((x - new_mean) * istd).astype(y_ref.dtype)
    mean_ref[...] = new_mean
    var_ref[...] = new_var


# --------------------------------------------------------------------------
# Pass 1: tiled shifted-moment accumulation, per-TensorCore partial sums.
# --------------------------------------------------------------------------
def _moments_kernel(rm_ref, x_ref, sum_ref, sumsq_ref, *,
                    rows, tile_rows, tiles_per_core):
    c = pl.program_id(0)
    t = pl.program_id(1)

    @pl.when(t == 0)
    def _():
        sum_ref[...] = jnp.zeros_like(sum_ref)
        sumsq_ref[...] = jnp.zeros_like(sumsq_ref)

    # Shifted moments: accumulate sum(x - rm) and sum((x - rm)^2) so the
    # finalize variance E[(x-rm)^2] - E[x-rm]^2 is well-conditioned.
    xc = x_ref[...].astype(jnp.float32) - rm_ref[...]

    gt = c * tiles_per_core + t          # global tile id (un-clamped)
    full_tiles = rows // tile_rows       # tiles with no ragged rows (static)

    # Hot path: unmasked accumulate — VALU stays under the tile DMA even at
    # v7x's 3.2 TB/s.
    @pl.when(gt < full_tiles)
    def _():
        sum_ref[...] += jnp.sum(xc, axis=0, keepdims=True)
        sumsq_ref[...] += jnp.sum(xc * xc, axis=0, keepdims=True)

    # Cold path: the (at most one) ragged tile, plus any phantom tile from
    # rounding the per-core tile count (its mask is all-False -> contributes 0).
    @pl.when(gt >= full_tiles)
    def _():
        row = gt * tile_rows + jax.lax.broadcasted_iota(jnp.int32, xc.shape, 0)
        xm = jnp.where(row < rows, xc, 0.0)
        sum_ref[...] += jnp.sum(xm, axis=0, keepdims=True)
        sumsq_ref[...] += jnp.sum(xm * xm, axis=0, keepdims=True)


# --------------------------------------------------------------------------
# Pass 2: tiled normalization with the updated running stats.
# --------------------------------------------------------------------------
def _normalize_kernel(x_ref, mean_ref, istd_ref, y_ref):
    x = x_ref[...].astype(jnp.float32)
    y_ref[...] = ((x - mean_ref[...]) * istd_ref[...]).astype(y_ref.dtype)


# --------------------------------------------------------------------------
# Sizing helpers.
# --------------------------------------------------------------------------
def _target_tile_bytes():
    """Generation-aware streaming-tile size.

    v5e's 16 MiB default scoped-VMEM budget is the binding constraint -> 2 MiB
    tiles there; v6e/v7x (32 MiB scoped default) get 4 MiB tiles.  Pass 2 peaks
    at Buffered(3)*tile + 2*tile (output) = 5 tiles, inside both budgets.
    """
    try:
        kind = jax.devices()[0].device_kind.lower()
    except Exception:
        kind = ""
    if "lite" in kind or "v5e" in kind:
        return 2 * 1024 * 1024
    return 4 * 1024 * 1024


def _pick_tile_rows(rows, lanes, target_bytes):
    tb = max(8, (target_bytes // (lanes * 4)) // 8 * 8)
    return rows if rows <= tb else tb


# --------------------------------------------------------------------------
# Wrapper: training-mode forward.
# --------------------------------------------------------------------------
def running_mean_std_forward(x, running_mean, running_var, count,
                             epsilon=1e-5, *, tile_bytes=None,
                             small_bytes=_SMALL_BYTES):
    """Returns (y, new_running_mean, new_running_var, new_count)."""
    orig_shape = x.shape
    B = x.shape[0]
    D = int(math.prod(x.shape[1:])) if x.ndim > 1 else 1
    x2 = x.reshape(B, D)

    stat_shape = running_mean.shape
    rm_vec = running_mean.astype(jnp.float32).reshape(D)
    rv_vec = running_var.astype(jnp.float32).reshape(D)
    eps = float(epsilon)

    # ---------------- small-batch fast path: one fused kernel ----------------
    if B * D * 4 <= small_bytes:
        count_arr = jnp.asarray(count, jnp.float32).reshape(1)
        y, nm, nv = pl.pallas_call(
            functools.partial(_fused_kernel, batch=B, epsilon=eps),
            out_shape=(jax.ShapeDtypeStruct((B, D), x.dtype),
                       jax.ShapeDtypeStruct((1, D), jnp.float32),
                       jax.ShapeDtypeStruct((1, D), jnp.float32)),
            in_specs=[pl.BlockSpec(memory_space=pltpu.MemorySpace.SMEM),
                      pl.BlockSpec(memory_space=pltpu.MemorySpace.VMEM),
                      pl.BlockSpec(memory_space=pltpu.MemorySpace.VMEM),
                      pl.BlockSpec(memory_space=pltpu.MemorySpace.VMEM)],
            out_specs=(pl.BlockSpec(memory_space=pltpu.MemorySpace.VMEM),
                       pl.BlockSpec(memory_space=pltpu.MemorySpace.VMEM),
                       pl.BlockSpec(memory_space=pltpu.MemorySpace.VMEM)),
        )(count_arr, x2, rm_vec.reshape(1, D), rv_vec.reshape(1, D))
        new_rm = nm.reshape(stat_shape).astype(running_mean.dtype)
        new_rv = nv.reshape(stat_shape).astype(running_var.dtype)
        # TODO(synk): `count` is a host Python scalar in the original module; if
        # it ever becomes a traced array this addition silently traces too.
        return y.reshape(orig_shape), new_rm, new_rv, count + B

    # ---------------- lane packing (keep last dim 128-dense) -----------------
    # TODO(synk): when D < 128 but 128 % D != 0, we run unpacked (lane width D);
    # padding D to a divisor of 128 would cost a full extra copy of x.
    G = 128 // D if (D < 128 and 128 % D == 0) else 1
    n_pad = (-B) % G
    if n_pad:
        # Pad with running-mean rows: exactly zero contribution to the shifted
        # moments; sliced off after pass 2.  Keeps both passes 128-lane dense.
        pad = jnp.broadcast_to(rm_vec.astype(x.dtype), (n_pad, D))
        x_work = jnp.concatenate([x2, pad], axis=0)
    else:
        x_work = x2
    rows = (B + n_pad) // G
    L = G * D
    xp = x_work.reshape(rows, L)
    rm_p = jnp.tile(rm_vec, G).reshape(1, L)

    if tile_bytes is None:
        tile_bytes = _target_tile_bytes()
    tb = _pick_tile_rows(rows, L, tile_bytes)
    num_tiles = pl.cdiv(rows, tb)

    # ---- pass 1: per-core shifted moments. "parallel" core axis lets both
    #      v7x TensorCores stream half the batch; the "arbitrary" tile axis
    #      carries a resident per-core accumulator. ---------------------------
    NC = 2 if num_tiles >= 2 else 1
    tpc = pl.cdiv(num_tiles, NC)       # tiles per core (last one may be phantom)
    last_block = num_tiles - 1

    def x_map(c, t):
        # Clamp phantom tiles onto the last real block (no OOB DMA); the kernel
        # masks their contribution to zero.
        return (jnp.minimum(c * tpc + t, last_block), 0)

    psum, psumsq = pl.pallas_call(
        functools.partial(_moments_kernel, rows=rows, tile_rows=tb,
                          tiles_per_core=tpc),
        out_shape=(jax.ShapeDtypeStruct((NC, 8, L), jnp.float32),
                   jax.ShapeDtypeStruct((NC, 8, L), jnp.float32)),
        grid=(NC, tpc),
        in_specs=[pl.BlockSpec((1, L), lambda c, t: (0, 0)),
                  pl.BlockSpec((tb, L), x_map)],
        out_specs=(pl.BlockSpec((1, 8, L), lambda c, t: (c, 0, 0)),
                   pl.BlockSpec((1, 8, L), lambda c, t: (c, 0, 0))),
        compiler_params=pltpu.CompilerParams(
            dimension_semantics=("parallel", "arbitrary")),
    )(rm_p, xp)

    # ---- O(D) finalize glue (left to XLA; negligible vs. the B*D streams) ----
    sum_x = psum[:, 0, :].sum(axis=0).reshape(G, D).sum(axis=0)      # (D,)
    sum_xsq = psumsq[:, 0, :].sum(axis=0).reshape(G, D).sum(axis=0)  # (D,)

    bcount = jnp.float32(B)
    count_f = jnp.asarray(count, jnp.float32)

    mean_shift = sum_x / bcount                      # batch_mean - running_mean
    batch_var = jnp.maximum(sum_xsq / bcount - mean_shift * mean_shift, 0.0)

    # update_mean_var_count_from_moments (delta == mean_shift by construction)
    tot_count = count_f + bcount
    new_mean = rm_vec + mean_shift * bcount / tot_count
    m2 = (rv_vec * count_f + batch_var * bcount
          + mean_shift * mean_shift * count_f * bcount / tot_count)
    new_var = m2 / tot_count
    inv_std = jax.lax.rsqrt(new_var + jnp.float32(eps))

    mean_p = jnp.tile(new_mean, G).reshape(1, L)
    istd_p = jnp.tile(inv_std, G).reshape(1, L)

    # ---- pass 2: normalize. "parallel" tiles (2 TCs on v7x); 3-deep input
    #      buffer only when each core sees enough steps to fill it. -----------
    x_spec = pl.BlockSpec((tb, L), lambda t: (t, 0))
    if num_tiles >= 8:   # >= 4 tiles per core even with megacore sharding
        x_spec = pl.BlockSpec((tb, L), lambda t: (t, 0),
                              pipeline_mode=pl.Buffered(3))

    yp = pl.pallas_call(
        _normalize_kernel,
        out_shape=jax.ShapeDtypeStruct((rows, L), x.dtype),
        grid=(num_tiles,),
        in_specs=[x_spec,
                  pl.BlockSpec((1, L), lambda t: (0, 0)),
                  pl.BlockSpec((1, L), lambda t: (0, 0))],
        out_specs=pl.BlockSpec((tb, L), lambda t: (t, 0)),
        compiler_params=pltpu.CompilerParams(
            dimension_semantics=("parallel",)),
    )(xp, mean_p, istd_p)

    y = yp.reshape(rows * G, D)[:B].reshape(orig_shape)

    new_rm = new_mean.reshape(stat_shape).astype(running_mean.dtype)
    new_rv = new_var.reshape(stat_shape).astype(running_var.dtype)
    # TODO(synk): `count` is a host Python scalar in the original module; if it
    # ever becomes a traced array this addition silently traces too.
    new_count = count + B
    return y, new_rm, new_rv, new_count


if __name__ == "__main__":
    def reference(x, rm, rv, count, eps):
        bm = x.mean(0)
        bv = jnp.mean((x - bm) ** 2, axis=0)
        b = x.shape[0]
        delta = bm - rm
        tot = count + b
        nrm = rm + delta * b / tot
        nrv = (rv * count + bv * b + delta ** 2 * count * b / tot) / tot
        y = (x - nrm) / jnp.sqrt(nrv + eps)
        return y, nrm, nrv, count + b

    eps = 1e-5
    key = jax.random.PRNGKey(0)
    cases = [
        # (B, D, tile_bytes)
        (8, 32, None),            # fused small-batch path
        (1226, 32, 64 * 1024),    # packed + padded + ragged + phantom tile
        (3000, 160, 64 * 1024),   # unpacked wide-D path with Buffered(3)
    ]
    for i, (B, D, tbytes) in enumerate(cases):
        key, k1 = jax.random.split(key)
        x = jax.random.normal(k1, (B, D), dtype=jnp.float32) * 2.0 + 0.5
        rm0 = jnp.zeros((D,), jnp.float32)
        rv0 = jnp.ones((D,), jnp.float32)
        count0 = 1000.0

        y, nrm, nrv, ncnt = running_mean_std_forward(
            x, rm0, rv0, count0, epsilon=eps, tile_bytes=tbytes)
        jax.block_until_ready((y, nrm, nrv))

        ry, rrm, rrv, rcnt = reference(x, rm0, rv0, count0, eps)
        assert y.shape == x.shape, f"case {i}: shape"
        assert jnp.allclose(nrm, rrm, atol=1e-4, rtol=1e-4), f"case {i}: mean"
        assert jnp.allclose(nrv, rrv, atol=1e-4, rtol=1e-4), f"case {i}: var"
        assert jnp.allclose(y, ry, atol=1e-4, rtol=1e-4), f"case {i}: y"
        assert abs(ncnt - rcnt) < 1e-6, f"case {i}: count"

    print("KERNEL_OK")
</pallas_src>

<mosaic_0001>
module attributes {stable_mosaic.version = 11 : i64} {
  func.func @_fused_kernel(%arg0: memref<1xf32, #tpu.memory_space<smem>>, %arg1: memref<8x32xf32, #tpu.memory_space<vmem>>, %arg2: memref<1x32xf32, #tpu.memory_space<vmem>>, %arg3: memref<1x32xf32, #tpu.memory_space<vmem>>, %arg4: memref<8x32xf32, #tpu.memory_space<vmem>>, %arg5: memref<1x32xf32, #tpu.memory_space<vmem>>, %arg6: memref<1x32xf32, #tpu.memory_space<vmem>>) attributes {dimension_semantics = [], scalar_prefetch = 0 : i64, scratch_operands = 0 : i64, tpu.core_type = #tpu.core_type<tc>} {
    %c0 = arith.constant 0 : index
    %c0_0 = arith.constant 0 : index
    %0 = vector.load %arg1[%c0, %c0_0] : memref<8x32xf32, #tpu.memory_space<vmem>>, vector<8x32xf32>
    %c0_1 = arith.constant 0 : index
    %c0_2 = arith.constant 0 : index
    %1 = vector.load %arg2[%c0_1, %c0_2] : memref<1x32xf32, #tpu.memory_space<vmem>>, vector<1x32xf32>
    %c0_3 = arith.constant 0 : index
    %c0_4 = arith.constant 0 : index
    %2 = vector.load %arg3[%c0_3, %c0_4] : memref<1x32xf32, #tpu.memory_space<vmem>>, vector<1x32xf32>
    %c0_5 = arith.constant 0 : index
    %3 = memref.load %arg0[%c0_5] : memref<1xf32, #tpu.memory_space<smem>>
    %4 = vector.broadcast %1 : vector<1x32xf32> to vector<8x32xf32>
    %5 = arith.subf %0, %4 : vector<8x32xf32>
    %cst = arith.constant dense<0.000000e+00> : vector<32xf32>
    %6 = vector.multi_reduction <add>, %5, %cst [0] : vector<8x32xf32> to vector<32xf32>
    %7 = vector.shape_cast %6 : vector<32xf32> to vector<1x32xf32>
    %cst_6 = arith.constant 8.000000e+00 : f32
    %8 = vector.broadcast %cst_6 : f32 to vector<1x32xf32>
    %9 = arith.divf %7, %8 : vector<1x32xf32>
    %10 = arith.mulf %5, %5 : vector<8x32xf32>
    %cst_7 = arith.constant dense<0.000000e+00> : vector<32xf32>
    %11 = vector.multi_reduction <add>, %10, %cst_7 [0] : vector<8x32xf32> to vector<32xf32>
    %12 = vector.shape_cast %11 : vector<32xf32> to vector<1x32xf32>
    %cst_8 = arith.constant 8.000000e+00 : f32
    %13 = vector.broadcast %cst_8 : f32 to vector<1x32xf32>
    %14 = arith.divf %12, %13 : vector<1x32xf32>
    %15 = arith.mulf %9, %9 : vector<1x32xf32>
    %16 = arith.subf %14, %15 : vector<1x32xf32>
    %cst_9 = arith.constant 0.000000e+00 : f32
    %17 = vector.broadcast %cst_9 : f32 to vector<1x32xf32>
    %18 = arith.maximumf %16, %17 : vector<1x32xf32>
    %cst_10 = arith.constant 8.000000e+00 : f32
    %19 = arith.addf %3, %cst_10 : f32
    %cst_11 = arith.constant 8.000000e+00 : f32
    %20 = vector.broadcast %cst_11 : f32 to vector<1x32xf32>
    %21 = arith.mulf %9, %20 : vector<1x32xf32>
    %22 = vector.broadcast %19 : f32 to vector<1x32xf32>
    %23 = arith.divf %21, %22 : vector<1x32xf32>
    %24 = arith.addf %1, %23 : vector<1x32xf32>
    %25 = vector.broadcast %3 : f32 to vector<1x32xf32>
    %26 = arith.mulf %2, %25 : vector<1x32xf32>
    %cst_12 = arith.constant 8.000000e+00 : f32
    %27 = vector.broadcast %cst_12 : f32 to vector<1x32xf32>
    %28 = arith.mulf %18, %27 : vector<1x32xf32>
    %29 = arith.addf %26, %28 : vector<1x32xf32>
    %30 = arith.mulf %9, %9 : vector<1x32xf32>
    %31 = vector.broadcast %3 : f32 to vector<1x32xf32>
    %32 = arith.mulf %30, %31 : vector<1x32xf32>
    %cst_13 = arith.constant 8.000000e+00 : f32
    %33 = vector.broadcast %cst_13 : f32 to vector<1x32xf32>
    %34 = arith.mulf %32, %33 : vector<1x32xf32>
    %35 = vector.broadcast %19 : f32 to vector<1x32xf32>
    %36 = arith.divf %34, %35 : vector<1x32xf32>
    %37 = arith.addf %29, %36 : vector<1x32xf32>
    %38 = vector.broadcast %19 : f32 to vector<1x32xf32>
    %39 = arith.divf %37, %38 : vector<1x32xf32>
    %cst_14 = arith.constant 9.99999974E-6 : f32
    %40 = vector.broadcast %cst_14 : f32 to vector<1x32xf32>
    %41 = arith.addf %39, %40 : vector<1x32xf32>
    %42 = math.rsqrt %41 : vector<1x32xf32>
    %43 = vector.broadcast %24 : vector<1x32xf32> to vector<8x32xf32>
    %44 = arith.subf %0, %43 : vector<8x32xf32>
    %45 = vector.broadcast %42 : vector<1x32xf32> to vector<8x32xf32>
    %46 = arith.mulf %44, %45 : vector<8x32xf32>
    %c0_15 = arith.constant 0 : index
    %c0_16 = arith.constant 0 : index
    %47 = vector.load %arg4[%c0_15, %c0_16] : memref<8x32xf32, #tpu.memory_space<vmem>>, vector<8x32xf32>
    tpu.vector_store %arg4[%c0_15, %c0_16], %46 {strides = array<i32>} : memref<8x32xf32, #tpu.memory_space<vmem>>, vector<8x32xf32>,
    %c0_17 = arith.constant 0 : index
    %c0_18 = arith.constant 0 : index
    %48 = vector.load %arg5[%c0_17, %c0_18] : memref<1x32xf32, #tpu.memory_space<vmem>>, vector<1x32xf32>
    tpu.vector_store %arg5[%c0_17, %c0_18], %24 {strides = array<i32>} : memref<1x32xf32, #tpu.memory_space<vmem>>, vector<1x32xf32>,
    %c0_19 = arith.constant 0 : index
    %c0_20 = arith.constant 0 : index
    %49 = vector.load %arg6[%c0_19, %c0_20] : memref<1x32xf32, #tpu.memory_space<vmem>>, vector<1x32xf32>
    tpu.vector_store %arg6[%c0_19, %c0_20], %39 {strides = array<i32>} : memref<1x32xf32, #tpu.memory_space<vmem>>, vector<1x32xf32>,
    return
  }
}

</mosaic_0001>

<llo_original>
// kernel: tpu_custom_call.1
$region0: #{tpu_custom_call.1}
  #allocation0 [shape = 'u32[]', space=smem, size = 0x4, offset = 0x4, fixed_abs, tag = 'smem constant byte address 0x4 - core index']
  #allocation1 [shape = 'u32[144,128]{1,0:T(1,128)}', space=vmem, size = 0x12000, scoped, tag = 'internal scratch']
  #allocation2 [shape = 'f32[1]{0:T(128)S(6)}', space=smem, size = 0x200, scoped, tag = 'scoped memory for tpu_custom_call.1']
  %s0 = inlined_call_operand.<no memory space> [shape: f32[1], index: 0, kind: input, shape index: {}]
  %s1 = inlined_call_operand.hbm [shape: f32[8,32], index: 1, kind: input, shape index: {}]
  %s2 = inlined_call_operand.vmem [shape: f32[1,32], index: 2, kind: input, shape index: {}]
  %s3 = inlined_call_operand.vmem [shape: f32[1,32], index: 3, kind: input, shape index: {}]
  %s4 = inlined_call_operand.hbm [shape: f32[8,32], index: 4, kind: output, shape index: {0}]
  %s5 = inlined_call_operand.hbm [shape: f32[1,32], index: 5, kind: output, shape index: {1}]
  %s6 = inlined_call_operand.hbm [shape: f32[1,32], index: 6, kind: output, shape index: {2}]
  %7 = xla_tuple %s4, %s5, %s6
  %s8 = sld [smem:[#allocation0]]
  $region46: #{tpu_custom_call.1} parent=0
    _
  %s10 = ssub.s32 1, %s8
  %s11 = scalar_select 0, %s10, %s8
  %12 = sst [smem:[#allocation2]] %s0
  $region1: #{tpu_custom_call.1} parent=0
    #allocation3 [shape = 'u8[4096]{0}', space=vmem, size = 0x1000, scoped, tag = 'input window, operand 1, single buffered']
    #allocation4 [shape = 's32[1]{0}', space=sflag, size = 0x4, scoped, tag = 'scoped memory for tpu_custom_call.1']
    #allocation5 [shape = 's32[1]{0}', space=sflag, size = 0x4, scoped, tag = 'scoped memory for tpu_custom_call.1']
    #allocation6 [shape = 'u8[4096]{0}', space=vmem, size = 0x1000, scoped, tag = 'output window, operand 0, single buffered']
    #allocation7 [shape = 'u8[512]{0}', space=vmem, size = 0x400, scoped, tag = 'output window, operand 1, single buffered']
    #allocation8 [shape = 's32[1]{0}', space=sflag, size = 0x4, scoped, tag = 'scoped memory for tpu_custom_call.1']
    #allocation9 [shape = 'u8[512]{0}', space=vmem, size = 0x400, scoped, tag = 'output window, operand 2, single buffered']
    %13 = vsyncpa [#allocation4], 0
    %14 = vsyncpa [#allocation5], 0
    %15 = vsyncpa [#allocation8], 0
    // Predicated region
    $region2: #{tpu_custom_call.1} parent=1 // pred_check
      _
    $region3: #{tpu_custom_call.1} parent=1 // pred_check_branch
      %17 = sbr.rel (0) target = $region5
    $region4: #{tpu_custom_call.1} parent=1 // pred_region
      _
    $region5: #{tpu_custom_call.1} parent=1 // pred_fallthru
      _
    // Predicated region
    $region6: #{tpu_custom_call.1} parent=1 // pred_check
      _
    $region7: #{tpu_custom_call.1} parent=1 // pred_check_branch
      %19 = sbr.rel (0) target = $region9
    $region8: #{tpu_custom_call.1} parent=1 // pred_region
      %s21 = ssub.s32 128, 128
      %22 = vsyncadd [#allocation4], %s21
      %s24 = sshll.u32 [#allocation3], 4
      %s25 = int_to_ptr.vmem [resolvable:$true] %s24
      %27 = dma.hbm_to_vmem [thread:$0]  %s1, 128, %s25, [#allocation4]
    $region9: #{tpu_custom_call.1} parent=1 // pred_fallthru
      _
    // Predicated region
    $region10: #{tpu_custom_call.1} parent=1 // pred_check
      _
    $region11: #{tpu_custom_call.1} parent=1 // pred_check_branch
      %29 = sbr.rel (0) target = $region13
    $region12: #{tpu_custom_call.1} parent=1 // pred_region
      _
    $region13: #{tpu_custom_call.1} parent=1 // pred_fallthru
      _
    // Predicated region
    $region14: #{tpu_custom_call.1} parent=1 // pred_check
      _
    $region15: #{tpu_custom_call.1} parent=1 // pred_check_branch
      %31 = sbr.rel (0) target = $region17
    $region16: #{tpu_custom_call.1} parent=1 // pred_region
      _
    $region17: #{tpu_custom_call.1} parent=1 // pred_fallthru
      _
    // Predicated region
    $region18: #{tpu_custom_call.1} parent=1 // pred_check
      _
    $region19: #{tpu_custom_call.1} parent=1 // pred_check_branch
      %33 = sbr.rel (0) target = $region21
    $region20: #{tpu_custom_call.1} parent=1 // pred_region
      %34 = dma.done [#allocation4], 128
    $region21: #{tpu_custom_call.1} parent=1 // pred_fallthru
      _
    %v35 = vld [vmem:[#allocation3] sm:$0xff]
    %v36 = vld [vmem:[%s2] sm:$0x1]
    %v37 = vld [vmem:[%s3] sm:$0x1]
    %s38 = sld [smem:[#allocation2]]
    %v40 = vlaneseq
    %v41 = vshrl.u32 %v40, 7
    %v42 = vsub.s32 0, %v41
    %v43 = vrot.slane %v36, %v42
    %v45 = vsub.f32 %v35, %v43
    %vm46 = vcmask 261120
    %v47 = vsel %vm46, %v45, 0.0
    %v48 = vrot.slane %v47, 4
    %v49 = vadd.f32 %v47, %v48
    %v50 = vrot.slane %v49, 2
    %v51 = vadd.f32 %v49, %v50
    %v52 = vrot.slane %v51, 1
    %v53 = vadd.f32 %v51, %v52
    %v54 = vrcp.pop 8.0
    %v55 = vmul.f32 %v53, %v54
    %v56 = vmul.f32 %v45, %v45
    %v57 = vsel %vm46, %v56, 0.0
    %v58 = vrot.slane %v57, 4
    %v59 = vadd.f32 %v57, %v58
    %v60 = vrot.slane %v59, 2
    %v61 = vadd.f32 %v59, %v60
    %v62 = vrot.slane %v61, 1
    %v63 = vadd.f32 %v61, %v62
    %v64 = vmul.f32 %v63, %v54
    %v65 = vmul.f32 %v55, %v55
    %v66 = vsub.f32 %v64, %v65
    %v67 = vmax.f32 %v66, 0.0
    %s68 = sadd.f32 %s38, 8.0
    %v69 = vmul.f32 %v55, 8.0
    %v70 = vstv %s68
    %v71 = vrcp.pop %v70
    %v72 = vmul.f32 %v69, %v71
    %v73 = vadd.f32 %v36, %v72
    %v74 = vstv %s38
    %v75 = vmul.f32 %v37, %v74
    %v76 = vmul.f32 %v67, 8.0
    %v77 = vadd.f32 %v75, %v76
    %v78 = vmul.f32 %v65, %v74
    %v79 = vmul.f32 %v78, 8.0
    %v80 = vmul.f32 %v79, %v71
    %v81 = vadd.f32 %v77, %v80
    %v82 = vmul.f32 %v81, %v71
    %v83 = vadd.f32 %v82, 1e-05
    %v84 = vrsqrt.pop %v83
    %v86 = vlaneseq
    %v87 = vshrl.u32 %v86, 7
    %v88 = vsub.s32 0, %v87
    %v89 = vrot.slane %v73, %v88
    %v91 = vsub.f32 %v35, %v89
    %v93 = vlaneseq
    %v94 = vshrl.u32 %v93, 7
    %v95 = vsub.s32 0, %v94
    %v96 = vrot.slane %v84, %v95
    %v98 = vmul.f32 %v91, %v96
    %99 = vst.msk [vmem:[#allocation6] sm:$0xff] %vm46, %v98
    %vm100 = vcmask 253952
    %101 = vst.msk [vmem:[#allocation7] sm:$0x1] %vm100, %v73
    %102 = vst.msk [vmem:[#allocation9] sm:$0x1] %vm100, %v82
    // Predicated region
    $region22: #{tpu_custom_call.1} parent=1 // pred_check
      _
    $region23: #{tpu_custom_call.1} parent=1 // pred_check_branch
      %104 = sbr.rel (0) target = $region25
    $region24: #{tpu_custom_call.1} parent=1 // pred_region
      %s106 = ssub.s32 128, 128
      %107 = vsyncadd [#allocation5], %s106
      %s109 = sshll.u32 [#allocation6], 4
      %s110 = int_to_ptr.vmem [resolvable:$true] %s109
      %112 = dma.vmem_to_hbm [thread:$0]  %s110, 128, %s4, [#allocation5]
    $region25: #{tpu_custom_call.1} parent=1 // pred_fallthru
      _
    // Predicated region
    $region26: #{tpu_custom_call.1} parent=1 // pred_check
      _
    $region27: #{tpu_custom_call.1} parent=1 // pred_check_branch
      %114 = sbr.rel (0) target = $region29
    $region28: #{tpu_custom_call.1} parent=1 // pred_region
      %s116 = ssub.s32 16, 16
      %117 = vsyncadd [#allocation8], %s116
      %s119 = sshll.u32 [#allocation7], 4
      %s120 = int_to_ptr.vmem [resolvable:$true] %s119
      %122 = dma.vmem_to_hbm [thread:$0]  %s120, 16, %s5, [#allocation8]
    $region29: #{tpu_custom_call.1} parent=1 // pred_fallthru
      _
    // Predicated region
    $region30: #{tpu_custom_call.1} parent=1 // pred_check
      _
    $region31: #{tpu_custom_call.1} parent=1 // pred_check_branch
      %124 = sbr.rel (0) target = $region33
    $region32: #{tpu_custom_call.1} parent=1 // pred_region
      %s126 = ssub.s32 16, 16
      %127 = vsyncadd [#allocation8], %s126
      %s129 = sshll.u32 [#allocation9], 4
      %s130 = int_to_ptr.vmem [resolvable:$true] %s129
      %132 = dma.vmem_to_hbm [thread:$0]  %s130, 16, %s6, [#allocation8]
    $region33: #{tpu_custom_call.1} parent=1 // pred_fallthru
      _
    // Predicated region
    $region34: #{tpu_custom_call.1} parent=1 // pred_check
      _
    $region35: #{tpu_custom_call.1} parent=1 // pred_check_branch
      %134 = sbr.rel (0) target = $region37
    $region36: #{tpu_custom_call.1} parent=1 // pred_region
      %135 = dma.done [#allocation5], 128
    $region37: #{tpu_custom_call.1} parent=1 // pred_fallthru
      _
    // Predicated region
    $region38: #{tpu_custom_call.1} parent=1 // pred_check
      _
    $region39: #{tpu_custom_call.1} parent=1 // pred_check_branch
      %137 = sbr.rel (0) target = $region41
    $region40: #{tpu_custom_call.1} parent=1 // pred_region
      %138 = dma.done [#allocation8], 16
    $region41: #{tpu_custom_call.1} parent=1 // pred_fallthru
      _
    // Predicated region
    $region42: #{tpu_custom_call.1} parent=1 // pred_check
      _
    $region43: #{tpu_custom_call.1} parent=1 // pred_check_branch
      %140 = sbr.rel (0) target = $region45
    $region44: #{tpu_custom_call.1} parent=1 // pred_region
      %141 = dma.done [#allocation8], 16
    $region45: #{tpu_custom_call.1} parent=1 // pred_fallthru
      _
    %142 = vsyncpa [#allocation4], 1
    %143 = vsyncpa [#allocation5], 1
    %144 = vsyncpa [#allocation8], 1

</llo_original>
